<compile_context>
chip_gen: v7x
topology: tpu7x:2x2x1
jax: 0.10.0
libtpu: 0.0.40
codegen_flags: <defaults>
</compile_context>

<pallas_src>
import math
import numpy as np
import jax
import jax.numpy as jnp
from jax.experimental import pallas as pl
from jax.experimental.pallas import tpu as pltpu


def _deconv_tile_kernel(x_ref, w_ref, b_ref, o_ref):
    # x_ref: (1, M*C_in, Q_TILE)        im2col-over-taps input tile (time on lanes)
    # w_ref: (stride*C_out, M*C_in)     folded phase+tap weights (VMEM resident)
    # b_ref: (stride*C_out, 1)          folded bias, f32
    # o_ref: (1, stride*C_out, Q_TILE)  per-phase output rows, lane-dense in time
    y = jnp.dot(w_ref[...], x_ref[0], preferred_element_type=jnp.float32)
    o_ref[0] = (y + b_ref[...]).astype(o_ref.dtype)


def _pick_q_tile(q_needed, contraction, rows, in_itemsize,
                 budget_bytes=6 * 1024 * 1024):
    """Largest lane tile (multiple of 128, <= 512) whose double-buffered
    input+output working set fits a conservative VMEM budget."""
    if q_needed <= 128:
        return q_needed                       # single full-width block (tiny inputs)
    t = 512
    while t > 128 and 2 * t * (contraction * in_itemsize + rows * 4) > budget_bytes:
        t //= 2
    return t


def causal_conv_transpose1d(x, weight, bias, stride, *, compute_dtype=jnp.float32):
    """x: (B, C_in, T); weight: (C_in, C_out, K) (ConvTranspose1d layout); bias: (C_out,).
    Returns (B, C_out, T_out) f32, matching
      ConvTranspose1d(...)(ReplicationPad1d((P, 0))(x))[:, :, stride:-stride]."""
    B, C_in, T = x.shape
    _, C_out, K = weight.shape
    P = math.ceil(K / stride) - 1              # causal (left) pad length
    M = P + 1                                  # taps per output phase
    T_in = T + P
    L = (T_in - 1) * stride + K                # full deconv length
    T_out = L - 2 * stride                     # kept length after [stride:-stride]
    Q_needed = -(-T_out // stride)             # time columns per phase actually needed
    MC = M * C_in
    R = stride * C_out

    in_itemsize = jnp.dtype(compute_dtype).itemsize
    q_tile = _pick_q_tile(Q_needed, MC, R, in_itemsize)
    n_qt = -(-Q_needed // q_tile)
    Q_pad = n_qt * q_tile

    # ---- wrapper glue: native (B, C, T) layout throughout (no NCT<->NTC transposes) ----
    x = x.astype(jnp.float32)
    if P > 0:  # replication pad on the left
        x_pad = jnp.concatenate([jnp.repeat(x[:, :, :1], P, axis=2), x], axis=2)
    else:
        x_pad = x
    # zero-extend so every shifted tap slice stays in range
    pad_l = max(0, M - 2)
    pad_r = max(0, Q_pad + 1 - T_in)
    x_z = jnp.pad(x_pad, ((0, 0), (0, 0), (pad_l, pad_r)))
    # im2col over taps: X_col[b, m*C_in+ci, j] = x_pad[b, ci, 1 + j - m]  (0 if OOB)
    x_col = jnp.concatenate(
        [x_z[:, :, pad_l + 1 - m: pad_l + 1 - m + Q_pad] for m in range(M)], axis=1
    ).astype(compute_dtype)                                            # (B, M*C_in, Q_pad)

    # fold taps + phases into one weight: W_fold[p*C_out+co, m*C_in+ci] = W[ci, co, p+m*stride]
    w_t = jnp.transpose(weight, (2, 1, 0)).astype(jnp.float32)         # (K, C_out, C_in)
    w_t = jnp.pad(w_t, ((0, stride * M - K), (0, 0), (0, 0)))          # zero taps k >= K
    w_fold = (jnp.transpose(w_t.reshape(M, stride, C_out, C_in), (1, 2, 0, 3))
              .reshape(R, MC).astype(compute_dtype))                   # (stride*C_out, M*C_in)
    b_fold = jnp.tile(bias.astype(jnp.float32), stride).reshape(R, 1)  # (stride*C_out, 1)

    out = pl.pallas_call(
        _deconv_tile_kernel,
        out_shape=jax.ShapeDtypeStruct((B, R, Q_pad), jnp.float32),
        grid=(B, n_qt),
        in_specs=[
            pl.BlockSpec((1, MC, q_tile), lambda b, q: (b, 0, q)),
            pl.BlockSpec((R, MC), lambda b, q: (0, 0)),     # weights: constant block -> 1 DMA
            pl.BlockSpec((R, 1), lambda b, q: (0, 0)),      # bias:    constant block -> 1 DMA
        ],
        out_specs=pl.BlockSpec((1, R, q_tile), lambda b, q: (b, 0, q)),
        compiler_params=pltpu.CompilerParams(
            dimension_semantics=("parallel", "parallel"),   # batch & time tiles independent
            vmem_limit_bytes=32 * 1024 * 1024,
        ),
    )(x_col, w_fold, b_fold)

    # interleave phases back into time: kept[b, co, j*stride + p] = out[b, p*C_out + co, j]
    y = (jnp.transpose(out.reshape(B, stride, C_out, Q_pad), (0, 2, 3, 1))
         .reshape(B, C_out, Q_pad * stride)[:, :, :T_out])
    return y


def _reference_forward(x, W, b, stride):
    """Naive numpy reference of CausalConvTranspose1d.forward."""
    B, C_in, T = x.shape
    _, C_out, K = W.shape
    P = math.ceil(K / stride) - 1
    xp = np.concatenate([np.repeat(x[:, :, :1], P, axis=2), x], axis=2) if P > 0 else x
    T_in = T + P
    L = (T_in - 1) * stride + K
    y = np.zeros((B, C_out, L), np.float32) + b[None, :, None]
    for s in range(T_in):
        for k in range(K):
            y[:, :, s * stride + k] += np.einsum('bi,io->bo', xp[:, :, s], W[:, :, k])
    return y[:, :, stride:L - stride]


if __name__ == "__main__":
    # module config: CausalConvTranspose1d(in_channels=4, out_channels=6, kernel_size=5, stride=2)
    B, C_in, T = 2, 4, 8
    C_out, K, stride = 6, 5, 2

    key = jax.random.PRNGKey(0)
    kx, kw, kb = jax.random.split(key, 3)
    x = jax.random.normal(kx, (B, C_in, T), dtype=jnp.float32)
    bound = 1.0 / math.sqrt(C_in * K)
    weight = jax.random.uniform(kw, (C_in, C_out, K), minval=-bound, maxval=bound,
                                dtype=jnp.float32)
    bias = jax.random.uniform(kb, (C_out,), minval=-bound, maxval=bound, dtype=jnp.float32)

    y_ref = _reference_forward(np.asarray(x), np.asarray(weight), np.asarray(bias), stride)

    # f32 path: tight tolerance against the PyTorch-equivalent reference
    y = jax.block_until_ready(causal_conv_transpose1d(x, weight, bias, stride))
    assert y.shape == y_ref.shape, (y.shape, y_ref.shape)
    assert np.allclose(np.asarray(y), y_ref, atol=1e-4, rtol=1e-4)

    # bf16 MXU-input path (perf-review recommendation for v6e/v7x); f32 accumulation
    y16 = jax.block_until_ready(
        causal_conv_transpose1d(x, weight, bias, stride, compute_dtype=jnp.bfloat16))
    assert y16.shape == y_ref.shape
    assert np.allclose(np.asarray(y16), y_ref, atol=5e-2, rtol=5e-2)

    print("KERNEL_OK")
</pallas_src>

<mosaic_0001>
module attributes {stable_mosaic.version = 11 : i64} {
  func.func @_deconv_tile_kernel(%arg0: i32, %arg1: i32, %arg2: memref<1x12x10xf32, #tpu.memory_space<vmem>>, %arg3: memref<12x12xf32, #tpu.memory_space<vmem>>, %arg4: memref<12x1xf32, #tpu.memory_space<vmem>>, %arg5: memref<1x12x10xf32, #tpu.memory_space<vmem>>) attributes {dimension_semantics = [#tpu.dimension_semantics<parallel>, #tpu.dimension_semantics<parallel>], iteration_bounds = array<i64: 2, 1>, scalar_prefetch = 0 : i64, scratch_operands = 0 : i64, tpu.core_type = #tpu.core_type<tc>, window_params = [{transform_indices = @transform_0, window_bounds = array<i64: 1, 12, 10>}, {pipeline_mode = #tpu.pipeline_mode<synchronous>, transform_indices = @transform_1, window_bounds = array<i64: 12, 12>}, {pipeline_mode = #tpu.pipeline_mode<synchronous>, transform_indices = @transform_2, window_bounds = array<i64: 12, 1>}, {transform_indices = @transform_3, window_bounds = array<i64: 1, 12, 10>}]} {
    %c0 = arith.constant 0 : index
    %c0_0 = arith.constant 0 : index
    %0 = vector.load %arg3[%c0, %c0_0] : memref<12x12xf32, #tpu.memory_space<vmem>>, vector<12x12xf32>
    %c0_1 = arith.constant 0 : index
    %c0_2 = arith.constant 0 : index
    %c0_3 = arith.constant 0 : index
    %1 = vector.load %arg2[%c0_1, %c0_2, %c0_3] : memref<1x12x10xf32, #tpu.memory_space<vmem>>, vector<1x12x10xf32>
    %2 = vector.shape_cast %1 : vector<1x12x10xf32> to vector<12x10xf32>
    %cst = arith.constant dense<0.000000e+00> : vector<12x10xf32>
    %3 = tpu.matmul %0, %2, %cst {dimension_numbers = #tpu.dot_dimension_numbers<[1], [0], [0], [1], [0, 0, 1, 1], [], []>} : vector<12x12xf32>, vector<12x10xf32>, vector<12x10xf32> -> vector<12x10xf32>
    %c0_4 = arith.constant 0 : index
    %c0_5 = arith.constant 0 : index
    %4 = vector.load %arg4[%c0_4, %c0_5] : memref<12x1xf32, #tpu.memory_space<vmem>>, vector<12x1xf32>
    %5 = vector.broadcast %4 : vector<12x1xf32> to vector<12x10xf32>
    %6 = arith.addf %3, %5 : vector<12x10xf32>
    %c0_6 = arith.constant 0 : index
    %c0_7 = arith.constant 0 : index
    %c0_8 = arith.constant 0 : index
    %7 = vector.load %arg5[%c0_6, %c0_7, %c0_8] : memref<1x12x10xf32, #tpu.memory_space<vmem>>, vector<1x12x10xf32>
    %8 = vector.shape_cast %7 : vector<1x12x10xf32> to vector<12x10xf32>
    %9 = vector.shape_cast %6 : vector<12x10xf32> to vector<1x12x10xf32>
    tpu.vector_store %arg5[%c0_6, %c0_7, %c0_8], %9 {strides = array<i32>} : memref<1x12x10xf32, #tpu.memory_space<vmem>>, vector<1x12x10xf32>,
    return
  }
  func.func @transform_0(%arg0: i32, %arg1: i32) -> (i32, i32, i32) {
    %c0_i32 = arith.constant 0 : i32
    %c0_i32_0 = arith.constant 0 : i32
    return %arg0, %c0_i32, %arg1 : i32, i32, i32
  }
  func.func @transform_1(%arg0: i32, %arg1: i32) -> (i32, i32) {
    %c0_i32 = arith.constant 0 : i32
    %c0_i32_0 = arith.constant 0 : i32
    %c0_i32_1 = arith.constant 0 : i32
    return %c0_i32, %c0_i32_0 : i32, i32
  }
  func.func @transform_2(%arg0: i32, %arg1: i32) -> (i32, i32) {
    %c0_i32 = arith.constant 0 : i32
    %c0_i32_0 = arith.constant 0 : i32
    %c0_i32_1 = arith.constant 0 : i32
    return %c0_i32, %c0_i32_0 : i32, i32
  }
  func.func @transform_3(%arg0: i32, %arg1: i32) -> (i32, i32, i32) {
    %c0_i32 = arith.constant 0 : i32
    %c0_i32_0 = arith.constant 0 : i32
    return %arg0, %c0_i32, %arg1 : i32, i32, i32
  }
}

</mosaic_0001>

<llo_original>
// kernel: tpu_custom_call.1
$region0: #{tpu_custom_call.1}
  #allocation0 [shape = 'u32[]', space=smem, size = 0x4, offset = 0x4, fixed_abs, tag = 'smem constant byte address 0x4 - core index']
  #allocation1 [shape = 'u32[144,128]{1,0:T(1,128)}', space=vmem, size = 0x12000, scoped, tag = 'internal scratch']
  %s0 = inlined_call_operand.vmem [shape: f32[2,12,10], index: 0, kind: input, shape index: {}]
  %s1 = inlined_call_operand.vmem [shape: f32[12,12], index: 1, kind: input, shape index: {}]
  %s2 = inlined_call_operand.vmem [shape: f32[12,1], index: 2, kind: input, shape index: {}]
  %s3 = inlined_call_operand.vmem [shape: f32[2,12,10], index: 3, kind: output, shape index: {}]
  %s4 = sld [smem:[#allocation0]]
  $region45: #{tpu_custom_call.1} parent=0
    _
  %s6 = ssub.s32 1, %s4
  %s7 = scalar_select 0, %s6, %s4
  loop: start=0, step=1, limit=4
  $region2: #{tpu_custom_call.1} parent=0 // loop_pre_header
    _
  $region3: #{tpu_custom_call.1} parent=0 // loop_header
    %s9 = sphi 0, %s13
    %p10 = scmp.ge.s32.totalorder %s9, 4
    %s16 = sphi 0, %s28
    %s17 = sphi 0, %s24
    %s18 = sphi 0, %s16
    %s19 = sphi 0, %s17
    %s20 = sphi 0, %s18
    %s21 = sphi 0, %s19
    %s33 = sphi 0, %s35
    %s36 = sphi 0, %s33
    %s37 = sphi 0, %s36
    %s53 = sphi 0, %s37
    %s57 = sphi 0, %s57
    %s59 = sphi 0, %s57
    %s60 = sphi 0, %s59
    %s74 = sphi 0, %s60
    %s78 = sphi 0, %s78
    %s80 = sphi 0, %s78
    %s81 = sphi 0, %s80
    %s95 = sphi 0, %s81
    %s103 = sphi 0, %s105
    %s106 = sphi 0, %s103
    %s107 = sphi 0, %s106
    %s123 = sphi 0, %s107
  $region4: #{tpu_custom_call.1} parent=0 // loop_header_branch
    %12 = sbr.rel (%p10) target = $region8
  $region5: #{tpu_custom_call.1} parent=0 // loop_body
    %s14 = ssub.s32 %s9, 1
    %s15 = ssub.s32 %s9, 2
    %s22 = sadd.s32 1, %s17
    %p23 = scmp.ge.s32.totalorder %s22, 1
    %s24 = scalar_select %p23, 0, %s22
    %s25 = sadd.s32 1, %s16
    %s26 = scalar_select %p23, %s25, %s16
    %p27 = scmp.ge.s32.totalorder %s26, 2
    %s28 = scalar_select %p27, 0, %s26
    %s29 = ssub.s32 %s16, %s28
    %s30 = ssub.s32 %s17, %s24
    %s31 = sor.u32 %s29, %s30
    %p32 = scmp.eq.s32.totalorder %s31, 0
    %s34 = sadd.s32 %s33, 1
    %s35 = scalar_select %p32, %s33, %s34
    %p38 = pneg %p32
    %p39 = scmp.eq.s32.totalorder %s9, 1
    %p40 = por %p38, %p39
    %p41 = scmp.ne.s32.totalorder %s33, %s36
    %p42 = scmp.eq.s32.totalorder %s9, 0
    %p43 = por %p41, %p42
    %p44 = scmp.ne.s32.totalorder %s33, %s36
    %p45 = scmp.eq.s32.totalorder %s14, 1
    %p46 = por %p44, %p45
    %p47 = scmp.ne.s32.totalorder %s36, %s37
    %p48 = scmp.eq.s32.totalorder %s14, 0
    %p49 = por %p47, %p48
    %p50 = scmp.ne.s32.totalorder %s36, %s37
    %p51 = scmp.eq.s32.totalorder %s15, 1
    %p52 = por %p50, %p51
    %p54 = scmp.ne.s32.totalorder %s37, %s53
    %p55 = scmp.eq.s32.totalorder %s15, 0
    %p56 = por %p54, %p55
    %s58 = sadd.s32 %s57, 1
    %p61 = scmp.eq.s32.totalorder %s9, 1
    %p62 = scmp.ne.s32.totalorder %s57, %s59
    %p63 = scmp.eq.s32.totalorder %s9, 0
    %p64 = por %p62, %p63
    %p65 = scmp.ne.s32.totalorder %s57, %s59
    %p66 = scmp.eq.s32.totalorder %s14, 1
    %p67 = por %p65, %p66
    %p68 = scmp.ne.s32.totalorder %s59, %s60
    %p69 = scmp.eq.s32.totalorder %s14, 0
    %p70 = por %p68, %p69
    %p71 = scmp.ne.s32.totalorder %s59, %s60
    %p72 = scmp.eq.s32.totalorder %s15, 1
    %p73 = por %p71, %p72
    %p75 = scmp.ne.s32.totalorder %s60, %s74
    %p76 = scmp.eq.s32.totalorder %s15, 0
    %p77 = por %p75, %p76
    %s79 = sadd.s32 %s78, 1
    %p82 = scmp.eq.s32.totalorder %s9, 1
    %p83 = scmp.ne.s32.totalorder %s78, %s80
    %p84 = scmp.eq.s32.totalorder %s9, 0
    %p85 = por %p83, %p84
    %p86 = scmp.ne.s32.totalorder %s78, %s80
    %p87 = scmp.eq.s32.totalorder %s14, 1
    %p88 = por %p86, %p87
    %p89 = scmp.ne.s32.totalorder %s80, %s81
    %p90 = scmp.eq.s32.totalorder %s14, 0
    %p91 = por %p89, %p90
    %p92 = scmp.ne.s32.totalorder %s80, %s81
    %p93 = scmp.eq.s32.totalorder %s15, 1
    %p94 = por %p92, %p93
    %p96 = scmp.ne.s32.totalorder %s81, %s95
    %p97 = scmp.eq.s32.totalorder %s15, 0
    %p98 = por %p96, %p97
    %s99 = ssub.s32 %s16, %s28
    %s100 = ssub.s32 %s17, %s24
    %s101 = sor.u32 %s99, %s100
    %p102 = scmp.eq.s32.totalorder %s101, 0
    %s104 = sadd.s32 %s103, 1
    %s105 = scalar_select %p102, %s103, %s104
    %p108 = pneg %p102
    %p109 = scmp.eq.s32.totalorder %s9, 1
    %p110 = por %p108, %p109
    %p111 = scmp.ne.s32.totalorder %s103, %s106
    %p112 = scmp.eq.s32.totalorder %s9, 0
    %p113 = por %p111, %p112
    %p114 = scmp.ne.s32.totalorder %s103, %s106
    %p115 = scmp.eq.s32.totalorder %s14, 1
    %p116 = por %p114, %p115
    %p117 = scmp.ne.s32.totalorder %s106, %s107
    %p118 = scmp.eq.s32.totalorder %s14, 0
    %p119 = por %p117, %p118
    %p120 = scmp.ne.s32.totalorder %s106, %s107
    %p121 = scmp.eq.s32.totalorder %s15, 1
    %p122 = por %p120, %p121
    %p124 = scmp.ne.s32.totalorder %s107, %s123
    %p125 = scmp.eq.s32.totalorder %s15, 0
    %p126 = por %p124, %p125
    %p127 = scmp.le.s32.totalorder 1, %s9
    %p128 = scmp.lt.s32.totalorder %s9, 3
    %p129 = pnand %p127, %p128
    %p130 = pneg %p129
    // Predicated region
    $region9: #{tpu_custom_call.1} parent=5 // pred_check
      _
    $region10: #{tpu_custom_call.1} parent=5 // pred_check_branch
      %132 = sbr.rel (%p129) target = $region12
    $region11: #{tpu_custom_call.1} parent=5 // pred_region
      %s133 = ssub.s32 %s9, 1
      // Predicated region
      $region13: #{tpu_custom_call.1} parent=11 // pred_check
        %p134 = pneg %p70
      $region14: #{tpu_custom_call.1} parent=11 // pred_check_branch
        %136 = sbr.rel (%p134) target = $region16
      $region15: #{tpu_custom_call.1} parent=11 // pred_region
        _
      $region16: #{tpu_custom_call.1} parent=11 // pred_fallthru
        _
      // Predicated region
      $region17: #{tpu_custom_call.1} parent=11 // pred_check
        %p137 = pneg %p91
      $region18: #{tpu_custom_call.1} parent=11 // pred_check_branch
        %139 = sbr.rel (%p137) target = $region20
      $region19: #{tpu_custom_call.1} parent=11 // pred_region
        _
      $region20: #{tpu_custom_call.1} parent=11 // pred_fallthru
        _
    $region12: #{tpu_custom_call.1} parent=5 // pred_fallthru
      _
    %p140 = scmp.lt.s32.totalorder %s9, 2
    // Predicated region
    $region21: #{tpu_custom_call.1} parent=5 // pred_check
      %p141 = pneg %p140
    $region22: #{tpu_custom_call.1} parent=5 // pred_check_branch
      %143 = sbr.rel (%p141) target = $region24
    $region23: #{tpu_custom_call.1} parent=5 // pred_region
      // Predicated region
      $region25: #{tpu_custom_call.1} parent=23 // pred_check
        %p144 = pneg %p43
      $region26: #{tpu_custom_call.1} parent=23 // pred_check_branch
        %146 = sbr.rel (%p144) target = $region28
      $region27: #{tpu_custom_call.1} parent=23 // pred_region
        %p147 = scmp.lt.s32.totalorder %s16, 1
        %s148 = scalar_select %p147, %s16, 1
        %p149 = scmp.lt.s32.totalorder %s17, 0
        %s150 = scalar_select %p149, %s17, 0
        %s151 = smul.addr %s148, 2
        %s152 = sadd.s32 %s150, %s151
        %s153 = smul.addr %s152, 8
        %s154 = scalar_lea.vmem %s0, %s153
      $region28: #{tpu_custom_call.1} parent=23 // pred_fallthru
        _
    $region24: #{tpu_custom_call.1} parent=5 // pred_fallthru
      _
    %p155 = scmp.le.s32.totalorder 1, %s9
    %p156 = scmp.lt.s32.totalorder %s9, 3
    %p157 = pnand %p155, %p156
    %p158 = pneg %p157
    // Predicated region
    $region29: #{tpu_custom_call.1} parent=5 // pred_check
      _
    $region30: #{tpu_custom_call.1} parent=5 // pred_check_branch
      %160 = sbr.rel (%p157) target = $region32
    $region31: #{tpu_custom_call.1} parent=5 // pred_region
      %s161 = ssub.s32 %s9, 1
      %p162 = scmp.lt.s32.totalorder %s18, 1
      %s163 = scalar_select %p162, %s18, 1
      %p164 = scmp.lt.s32.totalorder %s19, 0
      %s165 = scalar_select %p164, %s19, 0
      %s166 = smul.addr %s163, 2
      %s167 = sadd.s32 %s165, %s166
      %s168 = smul.addr %s167, 8
      %s169 = scalar_lea.vmem %s0, %s168
      %p170 = pneg %p49
      %p171 = pneg %p46
      %p172 = pneg %p70
      %p173 = pneg %p67
      %p174 = pneg %p91
      %p175 = pneg %p88
      %p176 = pneg %p119
      %p177 = pneg %p116
      %p178 = scmp.lt.s32.totalorder %s18, 1
      %s179 = scalar_select %p178, %s18, 1
      %p180 = scmp.lt.s32.totalorder %s19, 0
      %s181 = scalar_select %p180, %s19, 0
      %s182 = smul.addr %s179, 2
      %s183 = sadd.s32 %s181, %s182
      %s184 = smul.addr %s183, 8
      %s185 = scalar_lea.vmem %s3, %s184
      %p186 = scmp.lt.s32.totalorder %s18, 1
      %s187 = scalar_select %p186, %s18, 1
      %p188 = scmp.lt.s32.totalorder %s19, 0
      %s189 = scalar_select %p188, %s19, 0
      %s190 = smul.addr %s187, 2
      %s191 = sadd.s32 %s189, %s190
      %s192 = smul.addr %s191, 8
      %s193 = scalar_lea.vmem %s0, %s192
      %p194 = scmp.lt.s32.totalorder %s18, 1
      %s195 = scalar_select %p194, %s18, 1
      %p196 = scmp.lt.s32.totalorder %s19, 0
      %s197 = scalar_select %p196, %s19, 0
      %s198 = smul.addr %s195, 2
      %s199 = sadd.s32 %s197, %s198
      %s200 = smul.addr %s199, 8
      %s201 = scalar_lea.vmem %s3, %s200
      %v202 = vld [vmem:[%s1] sm:$0xff]
      %v203 = vld [vmem:[%s1 + $0x8] sm:$0xf]
      %v204 = vld [vmem:[%s193] sm:$0xff]
      %v205 = vld [vmem:[%s193 + $0x8] sm:$0xf]
      %v206 = vld [vmem:[%s2] sm:$0xff]
      %v207 = vld [vmem:[%s2 + $0x8] sm:$0xf]
      %209 = vset.pattern.permute.xlu0 0
      %210 = vperm.xlu0 %209, %v206
      %v211 = vpop.permute.xlu0 %210
      %214 = vset.pattern.permute.xlu0 0
      %215 = vperm.xlu0 %214, %v207
      %v216 = vpop.permute.xlu0 %215
      %vm218 = vcmask 97280
      %v220 = vsel %vm218, %v202, 0
      %v223 = vsel %vm218, %v203, 0
      %vm225 = vcmask 1043456
      %v227 = vsel %vm225, %v205, 0
      %229 = vmatprep.subr.mxu0 0.0
      %230 = vmatpush1.msra.mxu0 %v204
      %231 = vmatprep.subr.mxu0 0.0
      %232 = vmatpush1.msra.mxu0 %v227
      %233 = vmatprep.subr.mxu0 0.0
      %234 = vmatpush1.msra.mxu0 0.0
      %235 = vmatprep.subr.mxu0 0.0
      %236 = vmatpush1.msra.mxu0 0.0
      %237 = vmatprep.subr.mxu0 0.0
      %238 = vmatpush1.msra.mxu0 0.0
      %239 = vmatprep.subr.mxu0 0.0
      %240 = vmatpush1.msra.mxu0 0.0
      %241 = vmatprep.subr.mxu0 0.0
      %242 = vmatpush1.msra.mxu0 0.0
      %243 = vmatprep.subr.mxu0 0.0
      %244 = vmatpush1.msra.mxu0 0.0
      %245 = vmatprep.subr.mxu0 0.0
      %246 = vmatpush1.msra.mxu0 0.0
      %247 = vmatprep.subr.mxu0 0.0
      %248 = vmatpush1.msra.mxu0 0.0
      %249 = vmatprep.subr.mxu0 0.0
      %250 = vmatpush1.msra.mxu0 0.0
      %251 = vmatprep.subr.mxu0 0.0
      %252 = vmatpush1.msra.mxu0 0.0
      %253 = vmatprep.subr.mxu0 0.0
      %254 = vmatpush1.msra.mxu0 0.0
      %255 = vmatprep.subr.mxu0 0.0
      %256 = vmatpush1.msra.mxu0 0.0
      %257 = vmatprep.subr.mxu0 0.0
      %258 = vmatpush1.msra.mxu0 0.0
      %259 = vmatprep.subr.mxu0 0.0
      %260 = vmatpush1.msra.mxu0 0.0
      %261 = vmatprep.subr.mxu0 0.0
      %262 = vmatpush1.msra.mxu0 0.0
      %263 = vmatprep.subr.mxu0 0.0
      %264 = vmatpush1.msra.mxu0 0.0
      %265 = vmatprep.subr.mxu0 0.0
      %266 = vmatpush1.msra.mxu0 0.0
      %267 = vmatprep.subr.mxu0 0.0
      %268 = vmatpush1.msra.mxu0 0.0
      %269 = vmatprep.subr.mxu0 0.0
      %270 = vmatpush1.msra.mxu0 0.0
      %271 = vmatprep.subr.mxu0 0.0
      %272 = vmatpush1.msra.mxu0 0.0
      %273 = vmatprep.subr.mxu0 0.0
      %274 = vmatpush1.msra.mxu0 0.0
      %275 = vmatprep.subr.mxu0 0.0
      %276 = vmatpush1.msra.mxu0 0.0
      %277 = vmatprep.subr.mxu0 0.0
      %278 = vmatpush1.msra.mxu0 0.0
      %279 = vmatprep.subr.mxu0 0.0
      %280 = vmatpush1.msra.mxu0 0.0
      %281 = vmatprep.subr.mxu0 0.0
      %282 = vmatpush1.msra.mxu0 0.0
      %283 = vmatprep.subr.mxu0 0.0
      %284 = vmatpush1.msra.mxu0 0.0
      %285 = vmatprep.subr.mxu0 0.0
      %286 = vmatpush1.msra.mxu0 0.0
      %287 = vmatprep.subr.mxu0 0.0
      %288 = vmatpush1.msra.mxu0 0.0
      %289 = vmatprep.subr.mxu0 0.0
      %290 = vmatpush1.msra.mxu0 0.0
      %291 = vmatprep.subr.mxu0 0.0
      %292 = vmatpush1.msra.mxu0 0.0
      %293 = vmatprep.mubr.f32.mxu0 0.0
      %294 = vmatmul.mubr.f32.gmra.mrb[0].mxu0 %v220
      %v295 = vpop.f32.mrb[0].mxu0
      %v296 = vadd.f32 %v211, %v295
      %v297 = vpop.f32.mrb[0].mxu0
      %298 = vmatprep.mubr.f32.mxu0 0.0
      %299 = vmatmul.mubr.f32.gmra.mrb[0].mxu0 %v223
      %v300 = vpop.f32.mrb[0].mxu0
      %v301 = vadd.f32 %v216, %v300
      %v302 = vpop.f32.mrb[0].mxu0
      %303 = vdwg.mxu0
      %vm304 = vcmask 80896
      %305 = vst.msk [vmem:[%s201] sm:$0xff] %vm304, %v296
      %vm306 = vcmask 76800
      %307 = vst.msk [vmem:[%s201 + $0x8] sm:$0xf] %vm306, %v301
      %p308 = scmp.lt.s32.totalorder %s18, 1
      %s309 = scalar_select %p308, %s18, 1
      %p310 = scmp.lt.s32.totalorder %s19, 0
      %s311 = scalar_select %p310, %s19, 0
      %s312 = smul.addr %s309, 2
      %s313 = sadd.s32 %s311, %s312
      %s314 = smul.addr %s313, 8
      %s315 = scalar_lea.vmem %s3, %s314
      // Predicated region
      $region33: #{tpu_custom_call.1} parent=31 // pred_check
        %p316 = pneg %p116
      $region34: #{tpu_custom_call.1} parent=31 // pred_check_branch
        %318 = sbr.rel (%p316) target = $region36
      $region35: #{tpu_custom_call.1} parent=31 // pred_region
        _
      $region36: #{tpu_custom_call.1} parent=31 // pred_fallthru
        _
    $region32: #{tpu_custom_call.1} parent=5 // pred_fallthru
      _
    %p319 = scmp.le.s32.totalorder 2, %s9
    // Predicated region
    $region37: #{tpu_custom_call.1} parent=5 // pred_check
      %p320 = pneg %p319
    $region38: #{tpu_custom_call.1} parent=5 // pred_check_branch
      %322 = sbr.rel (%p320) target = $region40
    $region39: #{tpu_custom_call.1} parent=5 // pred_region
      %s323 = ssub.s32 %s9, 2
      // Predicated region
      $region41: #{tpu_custom_call.1} parent=39 // pred_check
        %p324 = pneg %p122
      $region42: #{tpu_custom_call.1} parent=39 // pred_check_branch
        %326 = sbr.rel (%p324) target = $region44
      $region43: #{tpu_custom_call.1} parent=39 // pred_region
        %p327 = scmp.lt.s32.totalorder %s20, 1
        %s328 = scalar_select %p327, %s20, 1
        %p329 = scmp.lt.s32.totalorder %s21, 0
        %s330 = scalar_select %p329, %s21, 0
        %s331 = smul.addr %s328, 2
        %s332 = sadd.s32 %s330, %s331
        %s333 = smul.addr %s332, 8
        %s334 = scalar_lea.vmem %s3, %s333
      $region44: #{tpu_custom_call.1} parent=39 // pred_fallthru
        _
    $region40: #{tpu_custom_call.1} parent=5 // pred_fallthru
      _
  $region6: #{tpu_custom_call.1} parent=0 // loop_footer
    %s13 = sadd.s32 1, %s9
  $region7: #{tpu_custom_call.1} parent=0 // loop_footer_branch
    %8 = sbr.rel target = $region3
  $region8: #{tpu_custom_call.1} parent=0 // loop_exit
    _

</llo_original>
